<compile_context>
chip_gen: v6e
topology: v6e:2x2x1
jax: 0.10.0
libtpu: 0.0.40
codegen_flags: <defaults>
</compile_context>

<pallas_src>
import functools

import jax
import jax.numpy as jnp
from jax.experimental import pallas as pl
from jax.experimental.pallas import tpu as pltpu


def _round_up(a, m):
    return (a + m - 1) // m * m


def _vmem_capacity_bytes():
    try:
        return int(pltpu.get_tpu_info().vmem_capacity_bytes)
    except Exception:
        return 64 * 1024 * 1024  # conservative (v7x-sized) default


# ---------------------------------------------------------------------------
# Stage 1: K/V projection, tiled over (batch, sequence).  bf16 out to HBM.
# ---------------------------------------------------------------------------
def _kv_proj_kernel(x_ref, wkv_ref, bkv_ref, kv_ref):
    x = x_ref[0]                                              # (TQ, Dp) bf16
    kv = jnp.dot(x, wkv_ref[...], preferred_element_type=jnp.float32)
    kv_ref[0] = (kv + bkv_ref[...]).astype(kv_ref.dtype)


# ---------------------------------------------------------------------------
# Stage 2: attention + residual/norm1 + FFN + residual/norm2 per query tile.
# ---------------------------------------------------------------------------
def _encoder_layer_kernel(
    x_ref, kv_ref,
    wq_ref, bq_ref, wo_ref, bo_ref,
    w1_ref, b1_ref, w2_ref, b2_ref,
    g1_ref, be1_ref, g2_ref, be2_ref,
    out_ref, *attn_refs,
    d_pad, seq_len, d_model,
):
    bf16 = jnp.bfloat16
    x_bf = x_ref[0]                                           # (TQ, Dp) bf16
    x = x_bf.astype(jnp.float32)                              # f32 residual path
    tq = x_bf.shape[0]

    # Column mask for LayerNorm statistics (only needed when D is padded).
    if d_pad != d_model:
        col_mask = jax.lax.broadcasted_iota(jnp.int32, (tq, d_pad), 1) < d_model
    else:
        col_mask = None

    def layernorm(v, gamma, beta, eps=1e-5):
        # Two-pass (centered) variance; padded gamma/beta are zero so padded
        # output columns stay exactly zero.
        mean = jnp.sum(v, axis=-1, keepdims=True) * (1.0 / d_model)
        c = v - mean
        c2 = c * c if col_mask is None else jnp.where(col_mask, c * c, 0.0)
        var = jnp.sum(c2, axis=-1, keepdims=True) * (1.0 / d_model)
        return c * jax.lax.rsqrt(var + eps) * gamma + beta

    # ---- Q projection for this tile (softmax scale folded into wq/bq) ----
    q = jnp.dot(x_bf, wq_ref[...], preferred_element_type=jnp.float32) + bq_ref[...]

    kv_seq = kv_ref.at[0]                                     # (Lp, 2*Dp) bf16 view
    k = kv_seq[:, pl.ds(0, d_pad)]                            # (Lp, Dp) bf16
    v = kv_seq[:, pl.ds(d_pad, d_pad)]                        # (Lp, Dp) bf16
    l_pad = k.shape[0]

    # ---- attention scores: contract on D (no K transpose in VMEM) ----
    scores = jax.lax.dot_general(
        q.astype(bf16), k, (((1,), (1,)), ((), ())),
        preferred_element_type=jnp.float32)                   # (TQ, Lp)

    if seq_len != l_pad:  # static: mask padded keys (K/V padded rows = bias)
        kcol = jax.lax.broadcasted_iota(jnp.int32, scores.shape, 1)
        scores = jnp.where(kcol < seq_len, scores, jnp.float32(-1e30))

    m = jnp.max(scores, axis=-1, keepdims=True)
    p = jnp.exp(scores - m)
    inv = 1.0 / jnp.sum(p, axis=-1, keepdims=True)            # exact: attn is an output
    attn = p * inv

    ctx = jnp.dot(attn.astype(bf16), v, preferred_element_type=jnp.float32)
    new_x = jnp.dot(ctx.astype(bf16), wo_ref[...],
                    preferred_element_type=jnp.float32) + bo_ref[...]

    # ---- residual + norm1 (dropout == identity in eval mode) ----
    x1 = layernorm(x + new_x, g1_ref[...], be1_ref[...])

    # ---- feed-forward: conv1(k=1) -> GELU(erf) -> conv2(k=1) ----
    h = jnp.dot(x1.astype(bf16), w1_ref[...],
                preferred_element_type=jnp.float32) + b1_ref[...]
    h = jax.nn.gelu(h, approximate=False)    # nn.GELU() default = exact erf
    y = jnp.dot(h.astype(bf16), w2_ref[...],
                preferred_element_type=jnp.float32) + b2_ref[...]

    # ---- residual + norm2 ----
    out_ref[0] = layernorm(x1 + y, g2_ref[...], be2_ref[...]).astype(out_ref.dtype)
    if attn_refs:
        attn_refs[0][0] = attn.astype(attn_refs[0].dtype)


def encoder_layer(x, params, *, attn_dtype=jnp.bfloat16, return_attn=True):
    B, L, D = x.shape
    F = params["w1"].shape[1]
    f32, bf16 = jnp.float32, jnp.bfloat16

    Dp = _round_up(D, 128)
    Fp = _round_up(F, 128)

    vmem_cap = _vmem_capacity_bytes()
    vmem_limit = int(vmem_cap * 3 // 4)   # 48 MiB on v7x, 96 MiB on v5e/v6e

    # Query-tile size: bigger tiles amortize per-step overhead and keep the
    # MXU full; only go to 512 where VMEM (v5e/v6e) comfortably allows it.
    if L >= 512 and vmem_cap >= 96 * 1024 * 1024:
        TQ = 512
    elif L >= 256:
        TQ = 256
    else:
        TQ = 128
    Lp = _round_up(L, TQ)
    NQ = Lp // TQ

    def padw(w, r, c, dtype):
        w = jnp.asarray(w, f32)
        return jnp.pad(w, ((0, r - w.shape[0]), (0, c - w.shape[1]))).astype(dtype)

    # x stored in HBM as bf16 (halves the largest DMA).
    x_p = jnp.pad(x.astype(f32), ((0, 0), (0, Lp - L), (0, Dp - D))).astype(bf16)

    # Fold the 1/sqrt(d_model) softmax scale into the Q projection.
    scale = 1.0 / (float(D) ** 0.5)
    wq = padw(params["wq"] * scale, Dp, Dp, bf16)
    bq = padw(params["bq"] * scale, 1, Dp, f32)
    wkv = jnp.concatenate([padw(params["wk"], Dp, Dp, bf16),
                           padw(params["wv"], Dp, Dp, bf16)], axis=1)
    bkv = jnp.concatenate([padw(params["bk"], 1, Dp, f32),
                           padw(params["bv"], 1, Dp, f32)], axis=1)
    wo = padw(params["wo"], Dp, Dp, bf16)
    bo = padw(params["bo"], 1, Dp, f32)
    w1 = padw(params["w1"], Dp, Fp, bf16)
    b1 = padw(params["b1"], 1, Fp, f32)
    w2 = padw(params["w2"], Fp, Dp, bf16)
    b2 = padw(params["b2"], 1, Dp, f32)
    g1 = padw(params["g1"], 1, Dp, f32)
    be1 = padw(params["be1"], 1, Dp, f32)
    g2 = padw(params["g2"], 1, Dp, f32)
    be2 = padw(params["be2"], 1, Dp, f32)

    def cparams():
        return pltpu.CompilerParams(
            dimension_semantics=("parallel", "parallel"),
            vmem_limit_bytes=vmem_limit)

    def const_spec(shape, buffered):
        kw = {"pipeline_mode": pl.Buffered(1)} if buffered else {}
        return pl.BlockSpec(shape, lambda *_: (0,) * len(shape), **kw)

    # ---------- stage 1: K/V projection (hoisted out of the attention grid) --
    def kv_call(buffered):
        return pl.pallas_call(
            _kv_proj_kernel,
            grid_spec=pltpu.PrefetchScalarGridSpec(
                num_scalar_prefetch=0,
                grid=(B, NQ),
                in_specs=[
                    pl.BlockSpec((1, TQ, Dp), lambda b, q: (b, q, 0)),
                    const_spec((Dp, 2 * Dp), buffered),
                    const_spec((1, 2 * Dp), buffered),
                ],
                out_specs=pl.BlockSpec((1, TQ, 2 * Dp), lambda b, q: (b, q, 0)),
            ),
            out_shape=jax.ShapeDtypeStruct((B, Lp, 2 * Dp), bf16),
            compiler_params=cparams(),
        )(x_p, wkv, bkv)

    # ---------- stage 2: attention + FFN + norms over (batch, query-tile) ----
    kernel = functools.partial(_encoder_layer_kernel,
                               d_pad=Dp, seq_len=L, d_model=D)

    out_shapes = [jax.ShapeDtypeStruct((B, Lp, Dp), f32)]
    out_specs = [pl.BlockSpec((1, TQ, Dp), lambda b, q: (b, q, 0))]
    if return_attn:
        out_shapes.append(jax.ShapeDtypeStruct((B, Lp, Lp), attn_dtype))
        out_specs.append(pl.BlockSpec((1, TQ, Lp), lambda b, q: (b, q, 0)))

    def main_call(kv, buffered):
        return pl.pallas_call(
            kernel,
            grid_spec=pltpu.PrefetchScalarGridSpec(
                num_scalar_prefetch=0,
                grid=(B, NQ),
                in_specs=[
                    pl.BlockSpec((1, TQ, Dp), lambda b, q: (b, q, 0)),
                    # Full K|V for this batch; block index constant over q so
                    # it is fetched once per batch by the pipeline.
                    pl.BlockSpec((1, Lp, 2 * Dp), lambda b, q: (b, 0, 0)),
                    const_spec((Dp, Dp), buffered), const_spec((1, Dp), buffered),
                    const_spec((Dp, Dp), buffered), const_spec((1, Dp), buffered),
                    const_spec((Dp, Fp), buffered), const_spec((1, Fp), buffered),
                    const_spec((Fp, Dp), buffered), const_spec((1, Dp), buffered),
                    const_spec((1, Dp), buffered), const_spec((1, Dp), buffered),
                    const_spec((1, Dp), buffered), const_spec((1, Dp), buffered),
                ],
                out_specs=out_specs,
            ),
            out_shape=tuple(out_shapes),
            compiler_params=cparams(),
        )(x_p, kv, wq, bq, wo, bo, w1, b1, w2, b2, g1, be1, g2, be2)

    # pl.Buffered(1) drops the dead second buffer of constant-index weights;
    # fall back to default double buffering if this Pallas version rejects it.
    try:
        kv = kv_call(True)
        results = main_call(kv, True)
    except Exception:
        kv = kv_call(False)
        results = main_call(kv, False)

    if return_attn:
        out_p, attn_p = results
        return out_p[:, :L, :D], attn_p[:, :L, :L]
    (out_p,) = results
    return out_p[:, :L, :D]


def make_params(key, d_model, d_ff):
    keys = jax.random.split(key, 10)
    s_attn = 1.0 / jnp.sqrt(jnp.float32(d_model))
    s_ff1 = 1.0 / jnp.sqrt(jnp.float32(d_model))
    s_ff2 = 1.0 / jnp.sqrt(jnp.float32(d_ff))
    return {
        "wq": jax.random.normal(keys[0], (d_model, d_model), jnp.float32) * s_attn,
        "wk": jax.random.normal(keys[1], (d_model, d_model), jnp.float32) * s_attn,
        "wv": jax.random.normal(keys[2], (d_model, d_model), jnp.float32) * s_attn,
        "wo": jax.random.normal(keys[3], (d_model, d_model), jnp.float32) * s_attn,
        "bq": jnp.zeros((1, d_model), jnp.float32),
        "bk": jnp.zeros((1, d_model), jnp.float32),
        "bv": jnp.zeros((1, d_model), jnp.float32),
        "bo": jnp.zeros((1, d_model), jnp.float32),
        # conv1: Conv1d(d_model -> d_ff, k=1)  == linear (D, F)
        "w1": jax.random.normal(keys[4], (d_model, d_ff), jnp.float32) * s_ff1,
        "b1": jax.random.normal(keys[5], (1, d_ff), jnp.float32) * 0.01,
        # conv2: Conv1d(d_ff -> d_model, k=1)  == linear (F, D)
        "w2": jax.random.normal(keys[6], (d_ff, d_model), jnp.float32) * s_ff2,
        "b2": jax.random.normal(keys[7], (1, d_model), jnp.float32) * 0.01,
        # LayerNorm affine params (PyTorch init: gamma=1, beta=0)
        "g1": jnp.ones((1, d_model), jnp.float32),
        "be1": jnp.zeros((1, d_model), jnp.float32),
        "g2": jnp.ones((1, d_model), jnp.float32),
        "be2": jnp.zeros((1, d_model), jnp.float32),
    }


def reference(x, p):
    # pure-JAX f32 reference of the same forward pass
    def ln(v, g, b, eps=1e-5):
        m = jnp.mean(v, axis=-1, keepdims=True)
        c = v - m
        var = jnp.mean(c * c, axis=-1, keepdims=True)
        return c * jax.lax.rsqrt(var + eps) * g + b

    D = x.shape[-1]
    q = x @ p["wq"] + p["bq"]
    k = x @ p["wk"] + p["bk"]
    v = x @ p["wv"] + p["bv"]
    scores = jnp.einsum("bld,bmd->blm", q, k) / jnp.sqrt(jnp.float32(D))
    attn = jax.nn.softmax(scores, axis=-1)
    new_x = jnp.einsum("blm,bmd->bld", attn, v) @ p["wo"] + p["bo"]
    x1 = ln(x + new_x, p["g1"], p["be1"])
    h = jax.nn.gelu(x1 @ p["w1"] + p["b1"], approximate=False)
    y = h @ p["w2"] + p["b2"]
    return ln(x1 + y, p["g2"], p["be2"]), attn


if __name__ == "__main__":
    B, L, d_model, d_ff = 2, 8, 32, 64
    key = jax.random.PRNGKey(0)
    kx, kp = jax.random.split(key)

    x = jax.random.normal(kx, (B, L, d_model), jnp.float32)
    params = make_params(kp, d_model, d_ff)

    out, attn = encoder_layer(x, params)
    out = jax.block_until_ready(out)
    attn = jax.block_until_ready(attn)

    ref_out, ref_attn = reference(x, params)
    assert out.shape == (B, L, d_model) and attn.shape == (B, L, L)
    # bf16 matmul operands / bf16 x and attn => looser tolerance than pure f32.
    assert jnp.allclose(out, ref_out, atol=3e-2, rtol=3e-2)
    assert jnp.allclose(attn.astype(jnp.float32), ref_attn, atol=3e-2, rtol=3e-2)
    assert bool(jnp.isfinite(out).all()) and bool(jnp.isfinite(attn.astype(jnp.float32)).all())

    # TODO(synk): nn.Dropout is treated as identity (eval mode); training-mode
    # stochastic dropout is not implemented in the kernel.
    print("KERNEL_OK")
</pallas_src>

<mosaic_0001>
module attributes {stable_mosaic.version = 11 : i64} {
  func.func @_kv_proj_kernel(%arg0: i32, %arg1: i32, %arg2: memref<1x128x128xbf16, #tpu.memory_space<vmem>>, %arg3: memref<128x256xbf16, #tpu.memory_space<vmem>>, %arg4: memref<1x256xf32, #tpu.memory_space<vmem>>, %arg5: memref<1x128x256xbf16, #tpu.memory_space<vmem>>) attributes {dimension_semantics = [#tpu.dimension_semantics<parallel>, #tpu.dimension_semantics<parallel>], iteration_bounds = array<i64: 2, 1>, scalar_prefetch = 0 : i64, scratch_operands = 0 : i64, tpu.core_type = #tpu.core_type<tc>, window_params = [{transform_indices = @transform_0, window_bounds = array<i64: 1, 128, 128>}, {pipeline_mode = #tpu.pipeline_mode<synchronous>, transform_indices = @transform_1, window_bounds = array<i64: 128, 256>}, {pipeline_mode = #tpu.pipeline_mode<synchronous>, transform_indices = @transform_2, window_bounds = array<i64: 1, 256>}, {transform_indices = @transform_3, window_bounds = array<i64: 1, 128, 256>}]} {
    %c0 = arith.constant 0 : index
    %c0_0 = arith.constant 0 : index
    %c0_1 = arith.constant 0 : index
    %0 = vector.load %arg2[%c0, %c0_0, %c0_1] : memref<1x128x128xbf16, #tpu.memory_space<vmem>>, vector<1x128x128xbf16>
    %1 = vector.shape_cast %0 : vector<1x128x128xbf16> to vector<128x128xbf16>
    %c0_2 = arith.constant 0 : index
    %c0_3 = arith.constant 0 : index
    %2 = vector.load %arg3[%c0_2, %c0_3] : memref<128x256xbf16, #tpu.memory_space<vmem>>, vector<128x256xbf16>
    %cst = arith.constant dense<0.000000e+00> : vector<128x256xf32>
    %3 = tpu.matmul %1, %2, %cst {dimension_numbers = #tpu.dot_dimension_numbers<[1], [0], [0], [1], [0, 0, 1, 1], [], []>} : vector<128x128xbf16>, vector<128x256xbf16>, vector<128x256xf32> -> vector<128x256xf32>
    %c0_4 = arith.constant 0 : index
    %c0_5 = arith.constant 0 : index
    %4 = vector.load %arg4[%c0_4, %c0_5] : memref<1x256xf32, #tpu.memory_space<vmem>>, vector<1x256xf32>
    %5 = vector.broadcast %4 : vector<1x256xf32> to vector<128x256xf32>
    %6 = arith.addf %3, %5 : vector<128x256xf32>
    %7 = arith.truncf %6 : vector<128x256xf32> to vector<128x256xbf16>
    %c0_6 = arith.constant 0 : index
    %c0_7 = arith.constant 0 : index
    %c0_8 = arith.constant 0 : index
    %8 = vector.load %arg5[%c0_6, %c0_7, %c0_8] : memref<1x128x256xbf16, #tpu.memory_space<vmem>>, vector<1x128x256xbf16>
    %9 = vector.shape_cast %8 : vector<1x128x256xbf16> to vector<128x256xbf16>
    %10 = vector.shape_cast %7 : vector<128x256xbf16> to vector<1x128x256xbf16>
    tpu.vector_store %arg5[%c0_6, %c0_7, %c0_8], %10 {strides = array<i32>} : memref<1x128x256xbf16, #tpu.memory_space<vmem>>, vector<1x128x256xbf16>,
    return
  }
  func.func @transform_0(%arg0: i32, %arg1: i32) -> (i32, i32, i32) {
    %c0_i32 = arith.constant 0 : i32
    %c0_i32_0 = arith.constant 0 : i32
    return %arg0, %arg1, %c0_i32 : i32, i32, i32
  }
  func.func @transform_1(%arg0: i32, %arg1: i32) -> (i32, i32) {
    %c0_i32 = arith.constant 0 : i32
    %c0_i32_0 = arith.constant 0 : i32
    %c0_i32_1 = arith.constant 0 : i32
    return %c0_i32, %c0_i32_0 : i32, i32
  }
  func.func @transform_2(%arg0: i32, %arg1: i32) -> (i32, i32) {
    %c0_i32 = arith.constant 0 : i32
    %c0_i32_0 = arith.constant 0 : i32
    %c0_i32_1 = arith.constant 0 : i32
    return %c0_i32, %c0_i32_0 : i32, i32
  }
  func.func @transform_3(%arg0: i32, %arg1: i32) -> (i32, i32, i32) {
    %c0_i32 = arith.constant 0 : i32
    %c0_i32_0 = arith.constant 0 : i32
    return %arg0, %arg1, %c0_i32 : i32, i32, i32
  }
}

module attributes {stable_mosaic.version = 11 : i64} {
  func.func @_kv_proj_kernel(%arg0: i32, %arg1: i32, %arg2: memref<1x128x128xbf16, #tpu.memory_space<vmem>>, %arg3: memref<128x256xbf16, #tpu.memory_space<vmem>>, %arg4: memref<1x256xf32, #tpu.memory_space<vmem>>, %arg5: memref<1x128x256xbf16, #tpu.memory_space<vmem>>) attributes {dimension_semantics = [#tpu.dimension_semantics<parallel>, #tpu.dimension_semantics<parallel>], iteration_bounds = array<i64: 2, 1>, scalar_prefetch = 0 : i64, scratch_operands = 0 : i64, tpu.core_type = #tpu.core_type<tc>, window_params = [{transform_indices = @transform_0, window_bounds = array<i64: 1, 128, 128>}, {pipeline_mode = #tpu.pipeline_mode<synchronous>, transform_indices = @transform_1, window_bounds = array<i64: 128, 256>}, {pipeline_mode = #tpu.pipeline_mode<synchronous>, transform_indices = @transform_2, window_bounds = array<i64: 1, 256>}, {transform_indices = @transform_3, window_bounds = array<i64: 1, 128, 256>}]} {
    %c0 = arith.constant 0 : index
    %c0_0 = arith.constant 0 : index
    %c0_1 = arith.constant 0 : index
    %0 = vector.load %arg2[%c0, %c0_0, %c0_1] : memref<1x128x128xbf16, #tpu.memory_space<vmem>>, vector<1x128x128xbf16>
    %1 = vector.shape_cast %0 : vector<1x128x128xbf16> to vector<128x128xbf16>
    %c0_2 = arith.constant 0 : index
    %c0_3 = arith.constant 0 : index
    %2 = vector.load %arg3[%c0_2, %c0_3] : memref<128x256xbf16, #tpu.memory_space<vmem>>, vector<128x256xbf16>
    %cst = arith.constant dense<0.000000e+00> : vector<128x256xf32>
    %3 = tpu.matmul %1, %2, %cst {dimension_numbers = #tpu.dot_dimension_numbers<[1], [0], [0], [1], [0, 0, 1, 1], [], []>} : vector<128x128xbf16>, vector<128x256xbf16>, vector<128x256xf32> -> vector<128x256xf32>
    %c0_4 = arith.constant 0 : index
    %c0_5 = arith.constant 0 : index
    %4 = vector.load %arg4[%c0_4, %c0_5] : memref<1x256xf32, #tpu.memory_space<vmem>>, vector<1x256xf32>
    %5 = vector.broadcast %4 : vector<1x256xf32> to vector<128x256xf32>
    %6 = arith.addf %3, %5 : vector<128x256xf32>
    %7 = arith.truncf %6 : vector<128x256xf32> to vector<128x256xbf16>
    %c0_6 = arith.constant 0 : index
    %c0_7 = arith.constant 0 : index
    %c0_8 = arith.constant 0 : index
    %8 = vector.load %arg5[%c0_6, %c0_7, %c0_8] : memref<1x128x256xbf16, #tpu.memory_space<vmem>>, vector<1x128x256xbf16>
    %9 = vector.shape_cast %8 : vector<1x128x256xbf16> to vector<128x256xbf16>
    %10 = vector.shape_cast %7 : vector<128x256xbf16> to vector<1x128x256xbf16>
    tpu.vector_store %arg5[%c0_6, %c0_7, %c0_8], %10 {strides = array<i32>} : memref<1x128x256xbf16, #tpu.memory_space<vmem>>, vector<1x128x256xbf16>,
    return
  }
  func.func @transform_0(%arg0: i32, %arg1: i32) -> (i32, i32, i32) {
    %c0_i32 = arith.constant 0 : i32
    %c0_i32_0 = arith.constant 0 : i32
    return %arg0, %arg1, %c0_i32 : i32, i32, i32
  }
  func.func @transform_1(%arg0: i32, %arg1: i32) -> (i32, i32) {
    %c0_i32 = arith.constant 0 : i32
    %c0_i32_0 = arith.constant 0 : i32
    %c0_i32_1 = arith.constant 0 : i32
    return %c0_i32, %c0_i32_0 : i32, i32
  }
  func.func @transform_2(%arg0: i32, %arg1: i32) -> (i32, i32) {
    %c0_i32 = arith.constant 0 : i32
    %c0_i32_0 = arith.constant 0 : i32
    %c0_i32_1 = arith.constant 0 : i32
    return %c0_i32, %c0_i32_0 : i32, i32
  }
  func.func @transform_3(%arg0: i32, %arg1: i32) -> (i32, i32, i32) {
    %c0_i32 = arith.constant 0 : i32
    %c0_i32_0 = arith.constant 0 : i32
    return %arg0, %arg1, %c0_i32 : i32, i32, i32
  }
}

</mosaic_0001>

<llo_original>
// kernel: tpu_custom_call.1
$region0: #{tpu_custom_call.1}
  #allocation0 [shape = 'u32[]', space=smem, size = 0x4, offset = 0x4, fixed_abs, tag = 'smem constant byte address 0x4 - core index']
  #allocation1 [shape = 'u32[144,128]{1,0:T(1,128)}', space=vmem, size = 0x12000, scoped, tag = 'internal scratch']
  %s0 = inlined_call_operand.hbm [shape: bf16[2,128,128], index: 0, kind: input, shape index: {}]
  %s1 = inlined_call_operand.hbm [shape: bf16[128,256], index: 1, kind: input, shape index: {}]
  %s2 = inlined_call_operand.vmem [shape: f32[1,256], index: 2, kind: input, shape index: {}]
  %s3 = inlined_call_operand.hbm [shape: bf16[2,128,256], index: 3, kind: output, shape index: {}]
  %s4 = sld [smem:[#allocation0]]
  $region53: #{tpu_custom_call.1} parent=0
    _
  %s6 = ssub.s32 1, %s4
  %s7 = scalar_select 0, %s6, %s4
  $region1: #{tpu_custom_call.1} parent=0
    #allocation2 [shape = 'u8[65536]{0}', space=vmem, size = 0x10000, scoped, tag = 'input window, operand 0']
    #allocation3 [shape = 's32[2]{0}', space=sflag, size = 0x8, scoped, tag = 'scoped memory for tpu_custom_call.1']
    #allocation4 [shape = 's32[2]{0}', space=sflag, size = 0x8, scoped, tag = 'scoped memory for tpu_custom_call.1']
    #allocation5 [shape = 'u8[65536]{0}', space=vmem, size = 0x10000, scoped, tag = 'input window, operand 1, single buffered']
    #allocation6 [shape = 's32[1]{0}', space=sflag, size = 0x4, scoped, tag = 'scoped memory for tpu_custom_call.1']
    #allocation7 [shape = 'u8[131072]{0}', space=vmem, size = 0x20000, scoped, tag = 'output window, operand 0']
    %8 = vsyncpa [#allocation3], 0
    %s9 = scalar_lea.sflag [#allocation3], 1
    %10 = vsyncpa %s9, 0
    %11 = vsyncpa [#allocation6], 0
    %12 = vsyncpa [#allocation4], 0
    %s13 = scalar_lea.sflag [#allocation4], 1
    %14 = vsyncpa %s13, 0
    loop: start=0, step=1, limit=4
    $region2: #{tpu_custom_call.1} parent=1 // loop_pre_header
      _
    $region3: #{tpu_custom_call.1} parent=1 // loop_header
      %s16 = sphi 0, %s20
      %p17 = scmp.ge.s32.totalorder %s16, 4
      %s23 = sphi 0, %s35
      %s24 = sphi 0, %s31
      %s25 = sphi 0, %s23
      %s26 = sphi 0, %s24
      %s27 = sphi 0, %s25
      %s28 = sphi 0, %s26
      %s40 = sphi 0, %s42
      %s43 = sphi 0, %s40
      %s44 = sphi 0, %s43
      %s60 = sphi 0, %s44
      %s64 = sphi 0, %s64
      %s66 = sphi 0, %s64
      %s67 = sphi 0, %s66
      %s81 = sphi 0, %s67
      %s85 = sphi 0, %s85
      %s87 = sphi 0, %s85
      %s88 = sphi 0, %s87
      %s102 = sphi 0, %s88
      %s110 = sphi 0, %s112
      %s113 = sphi 0, %s110
      %s114 = sphi 0, %s113
      %s130 = sphi 0, %s114
    $region4: #{tpu_custom_call.1} parent=1 // loop_header_branch
      %19 = sbr.rel (%p17) target = $region8
    $region5: #{tpu_custom_call.1} parent=1 // loop_body
      %s21 = ssub.s32 %s16, 1
      %s22 = ssub.s32 %s16, 2
      %s29 = sadd.s32 1, %s24
      %p30 = scmp.ge.s32.totalorder %s29, 1
      %s31 = scalar_select %p30, 0, %s29
      %s32 = sadd.s32 1, %s23
      %s33 = scalar_select %p30, %s32, %s23
      %p34 = scmp.ge.s32.totalorder %s33, 2
      %s35 = scalar_select %p34, 0, %s33
      %s36 = ssub.s32 %s23, %s35
      %s37 = ssub.s32 %s24, %s31
      %s38 = sor.u32 %s36, %s37
      %p39 = scmp.eq.s32.totalorder %s38, 0
      %s41 = sadd.s32 %s40, 1
      %s42 = scalar_select %p39, %s40, %s41
      %p45 = pneg %p39
      %p46 = scmp.eq.s32.totalorder %s16, 1
      %p47 = por %p45, %p46
      %p48 = scmp.ne.s32.totalorder %s40, %s43
      %p49 = scmp.eq.s32.totalorder %s16, 0
      %p50 = por %p48, %p49
      %p51 = scmp.ne.s32.totalorder %s40, %s43
      %p52 = scmp.eq.s32.totalorder %s21, 1
      %p53 = por %p51, %p52
      %p54 = scmp.ne.s32.totalorder %s43, %s44
      %p55 = scmp.eq.s32.totalorder %s21, 0
      %p56 = por %p54, %p55
      %p57 = scmp.ne.s32.totalorder %s43, %s44
      %p58 = scmp.eq.s32.totalorder %s22, 1
      %p59 = por %p57, %p58
      %p61 = scmp.ne.s32.totalorder %s44, %s60
      %p62 = scmp.eq.s32.totalorder %s22, 0
      %p63 = por %p61, %p62
      %s65 = sadd.s32 %s64, 1
      %p68 = scmp.eq.s32.totalorder %s16, 1
      %p69 = scmp.ne.s32.totalorder %s64, %s66
      %p70 = scmp.eq.s32.totalorder %s16, 0
      %p71 = por %p69, %p70
      %p72 = scmp.ne.s32.totalorder %s64, %s66
      %p73 = scmp.eq.s32.totalorder %s21, 1
      %p74 = por %p72, %p73
      %p75 = scmp.ne.s32.totalorder %s66, %s67
      %p76 = scmp.eq.s32.totalorder %s21, 0
      %p77 = por %p75, %p76
      %p78 = scmp.ne.s32.totalorder %s66, %s67
      %p79 = scmp.eq.s32.totalorder %s22, 1
      %p80 = por %p78, %p79
      %p82 = scmp.ne.s32.totalorder %s67, %s81
      %p83 = scmp.eq.s32.totalorder %s22, 0
      %p84 = por %p82, %p83
      %s86 = sadd.s32 %s85, 1
      %p89 = scmp.eq.s32.totalorder %s16, 1
      %p90 = scmp.ne.s32.totalorder %s85, %s87
      %p91 = scmp.eq.s32.totalorder %s16, 0
      %p92 = por %p90, %p91
      %p93 = scmp.ne.s32.totalorder %s85, %s87
      %p94 = scmp.eq.s32.totalorder %s21, 1
      %p95 = por %p93, %p94
      %p96 = scmp.ne.s32.totalorder %s87, %s88
      %p97 = scmp.eq.s32.totalorder %s21, 0
      %p98 = por %p96, %p97
      %p99 = scmp.ne.s32.totalorder %s87, %s88
      %p100 = scmp.eq.s32.totalorder %s22, 1
      %p101 = por %p99, %p100
      %p103 = scmp.ne.s32.totalorder %s88, %s102
      %p104 = scmp.eq.s32.totalorder %s22, 0
      %p105 = por %p103, %p104
      %s106 = ssub.s32 %s23, %s35
      %s107 = ssub.s32 %s24, %s31
      %s108 = sor.u32 %s106, %s107
      %p109 = scmp.eq.s32.totalorder %s108, 0
      %s111 = sadd.s32 %s110, 1
      %s112 = scalar_select %p109, %s110, %s111
      %p115 = pneg %p109
      %p116 = scmp.eq.s32.totalorder %s16, 1
      %p117 = por %p115, %p116
      %p118 = scmp.ne.s32.totalorder %s110, %s113
      %p119 = scmp.eq.s32.totalorder %s16, 0
      %p120 = por %p118, %p119
      %p121 = scmp.ne.s32.totalorder %s110, %s113
      %p122 = scmp.eq.s32.totalorder %s21, 1
      %p123 = por %p121, %p122
      %p124 = scmp.ne.s32.totalorder %s113, %s114
      %p125 = scmp.eq.s32.totalorder %s21, 0
      %p126 = por %p124, %p125
      %p127 = scmp.ne.s32.totalorder %s113, %s114
      %p128 = scmp.eq.s32.totalorder %s22, 1
      %p129 = por %p127, %p128
      %p131 = scmp.ne.s32.totalorder %s114, %s130
      %p132 = scmp.eq.s32.totalorder %s22, 0
      %p133 = por %p131, %p132
      %p134 = scmp.le.s32.totalorder 1, %s16
      %p135 = scmp.lt.s32.totalorder %s16, 3
      %p136 = pnand %p134, %p135
      %p137 = pneg %p136
      // Predicated region
      $region9: #{tpu_custom_call.1} parent=5 // pred_check
        _
      $region10: #{tpu_custom_call.1} parent=5 // pred_check_branch
        %139 = sbr.rel (%p136) target = $region12
      $region11: #{tpu_custom_call.1} parent=5 // pred_region
        %s140 = ssub.s32 %s16, 1
        // Predicated region
        $region13: #{tpu_custom_call.1} parent=11 // pred_check
          %p141 = pneg %p77
        $region14: #{tpu_custom_call.1} parent=11 // pred_check_branch
          %143 = sbr.rel (%p141) target = $region16
        $region15: #{tpu_custom_call.1} parent=11 // pred_region
          %s145 = ssub.s32 2048, 2048
          %146 = vsyncadd [#allocation6], %s145
          %s147 = sshll.u32 [#allocation5], 4
          %s148 = int_to_ptr.vmem [resolvable:$true] %s147
          %153 = dma.hbm_to_vmem [thread:$0]  %s1, 2048, %s148, [#allocation6], 128, 128, 8
        $region16: #{tpu_custom_call.1} parent=11 // pred_fallthru
          _
        // Predicated region
        $region17: #{tpu_custom_call.1} parent=11 // pred_check
          %p154 = pneg %p98
        $region18: #{tpu_custom_call.1} parent=11 // pred_check_branch
          %156 = sbr.rel (%p154) target = $region20
        $region19: #{tpu_custom_call.1} parent=11 // pred_region
          _
        $region20: #{tpu_custom_call.1} parent=11 // pred_fallthru
          _
      $region12: #{tpu_custom_call.1} parent=5 // pred_fallthru
        _
      %p157 = scmp.lt.s32.totalorder %s16, 2
      // Predicated region
      $region21: #{tpu_custom_call.1} parent=5 // pred_check
        %p158 = pneg %p157
      $region22: #{tpu_custom_call.1} parent=5 // pred_check_branch
        %160 = sbr.rel (%p158) target = $region24
      $region23: #{tpu_custom_call.1} parent=5 // pred_region
        // Predicated region
        $region25: #{tpu_custom_call.1} parent=23 // pred_check
          %p161 = pneg %p50
        $region26: #{tpu_custom_call.1} parent=23 // pred_check_branch
          %163 = sbr.rel (%p161) target = $region28
        $region27: #{tpu_custom_call.1} parent=23 // pred_region
          %s164 = sand.u32 %s40, 1
          %s165 = scalar_lea.sflag [#allocation3], %s164
          %s166 = sand.u32 %s40, 1
          %s167 = smul.addr %s166, 64
          %s168 = scalar_lea.vmem [#allocation2], %s167
          %s169 = smul.u32 16, %s24
          %s171 = ssub.s32 1024, 1024
          %172 = vsyncadd %s165, %s171
          %s173 = smul.addr %s23, 16
          %s174 = sadd.s32 %s169, %s173
          %s175 = smul.addr %s174, 64
          %s176 = scalar_lea.hbm %s0, %s175
          %s177 = sshll.u32 %s168, 4
          %s178 = int_to_ptr.vmem [resolvable:$true] %s177
          %183 = dma.hbm_to_vmem [thread:$0]  %s176, 1024, %s178, %s165, 64, 64, 4
        $region28: #{tpu_custom_call.1} parent=23 // pred_fallthru
          _
      $region24: #{tpu_custom_call.1} parent=5 // pred_fallthru
        _
      %p184 = scmp.le.s32.totalorder 1, %s16
      %p185 = scmp.lt.s32.totalorder %s16, 3
      %p186 = pnand %p184, %p185
      %p187 = pneg %p186
      // Predicated region
      $region29: #{tpu_custom_call.1} parent=5 // pred_check
        _
      $region30: #{tpu_custom_call.1} parent=5 // pred_check_branch
        %189 = sbr.rel (%p186) target = $region32
      $region31: #{tpu_custom_call.1} parent=5 // pred_region
        %s190 = ssub.s32 %s16, 1
        %s191 = sand.u32 %s43, 1
        %s192 = scalar_lea.sflag [#allocation3], %s191
        %s193 = sand.u32 %s43, 1
        %s194 = smul.addr %s193, 64
        %s195 = scalar_lea.vmem [#allocation2], %s194
        // Predicated region
        $region33: #{tpu_custom_call.1} parent=31 // pred_check
          %p196 = pneg %p56
        $region34: #{tpu_custom_call.1} parent=31 // pred_check_branch
          %198 = sbr.rel (%p196) target = $region36
        $region35: #{tpu_custom_call.1} parent=31 // pred_region
          %199 = dma.done %s192, 1024
        $region36: #{tpu_custom_call.1} parent=31 // pred_fallthru
          _
        // Predicated region
        $region37: #{tpu_custom_call.1} parent=31 // pred_check
          %p200 = pneg %p77
        $region38: #{tpu_custom_call.1} parent=31 // pred_check_branch
          %202 = sbr.rel (%p200) target = $region40
        $region39: #{tpu_custom_call.1} parent=31 // pred_region
          %203 = dma.done [#allocation6], 2048
        $region40: #{tpu_custom_call.1} parent=31 // pred_fallthru
          _
        %s204 = sand.u32 %s43, 1
        %s205 = scalar_lea.sflag [#allocation3], %s204
        %s206 = sand.u32 %s43, 1
        %s207 = smul.addr %s206, 64
        %s208 = scalar_lea.vmem [#allocation2], %s207
        %p209 = pneg %p56
        %p210 = pneg %p53
        %p211 = pneg %p77
        %p212 = pneg %p74
        %p213 = pneg %p98
        %p214 = pneg %p95
        %p215 = pneg %p126
        %p216 = pneg %p123
        %s217 = sand.u32 %s113, 1
        %s218 = scalar_lea.sflag [#allocation4], %s217
        %s219 = sand.u32 %s113, 1
        %s220 = smul.addr %s219, 128
        %s221 = scalar_lea.vmem [#allocation7], %s220
        %s222 = smul.u32 16, %s26
        %s223 = smul.u32 16, %s26
        %v225 = vld [vmem:[%s195] sm:$0xf]
        %v226 = vld [vmem:[%s195 + $0x4] sm:$0xf]
        %v227 = vld [vmem:[%s195 + $0x8] sm:$0xf]
        %v228 = vld [vmem:[%s195 + $0xc] sm:$0xf]
        %v229 = vld [vmem:[%s195 + $0x10] sm:$0xf]
        %v230 = vld [vmem:[%s195 + $0x14] sm:$0xf]
        %v231 = vld [vmem:[%s195 + $0x18] sm:$0xf]
        %v232 = vld [vmem:[%s195 + $0x1c] sm:$0xf]
        %v233 = vld [vmem:[%s195 + $0x20] sm:$0xf]
        %v234 = vld [vmem:[%s195 + $0x24] sm:$0xf]
        %v235 = vld [vmem:[%s195 + $0x28] sm:$0xf]
        %v236 = vld [vmem:[%s195 + $0x2c] sm:$0xf]
        %v237 = vld [vmem:[%s195 + $0x30] sm:$0xf]
        %v238 = vld [vmem:[%s195 + $0x34] sm:$0xf]
        %v239 = vld [vmem:[%s195 + $0x38] sm:$0xf]
        %v240 = vld [vmem:[%s195 + $0x3c] sm:$0xf]
        %v241 = vld [vmem:[#allocation5] sm:$0xff]
        %v242 = vld [vmem:[#allocation5 + $0x8] sm:$0xff]
        %v243 = vld [vmem:[#allocation5 + $0x10] sm:$0xff]
        %v244 = vld [vmem:[#allocation5 + $0x18] sm:$0xff]
        %v245 = vld [vmem:[#allocation5 + $0x20] sm:$0xff]
        %v246 = vld [vmem:[#allocation5 + $0x28] sm:$0xff]
        %v247 = vld [vmem:[#allocation5 + $0x30] sm:$0xff]
        %v248 = vld [vmem:[#allocation5 + $0x38] sm:$0xff]
        %v249 = vld [vmem:[#allocation5 + $0x40] sm:$0xff]
        %v250 = vld [vmem:[#allocation5 + $0x48] sm:$0xff]
        %v251 = vld [vmem:[#allocation5 + $0x50] sm:$0xff]
        %v252 = vld [vmem:[#allocation5 + $0x58] sm:$0xff]
        %v253 = vld [vmem:[#allocation5 + $0x60] sm:$0xff]
        %v254 = vld [vmem:[#allocation5 + $0x68] sm:$0xff]
        %v255 = vld [vmem:[#allocation5 + $0x70] sm:$0xff]
        %v256 = vld [vmem:[#allocation5 + $0x78] sm:$0xff]
        %v257 = vld [vmem:[%s2] sm:$0x3]
        %v259 = vlaneseq
        %v260 = vshrl.u32 %v259, 7
        %v261 = vsub.s32 0, %v260
        %v262 = vrot.slane %v257, %v261
        %v263 = vlaneseq
        %v264 = vshrl.u32 %v263, 7
        %v265 = vsub.s32 1, %v264
        %v266 = vrot.slane %v257, %v265
        %v285 = vunpack.c.l.b16 %v225
        %v286 = vunpack.c.l.b16 %v226
        %v287 = vunpack.c.l.b16 %v227
        %v288 = vunpack.c.l.b16 %v228
        %v289 = vunpack.c.l.b16 %v229
        %v290 = vunpack.c.l.b16 %v230
        %v291 = vunpack.c.l.b16 %v231
        %v292 = vunpack.c.l.b16 %v232
        %v293 = vunpack.c.l.b16 %v233
        %v294 = vunpack.c.l.b16 %v234
        %v295 = vunpack.c.l.b16 %v235
        %v296 = vunpack.c.l.b16 %v236
        %v297 = vunpack.c.l.b16 %v237
        %v298 = vunpack.c.l.b16 %v238
        %v299 = vunpack.c.l.b16 %v239
        %v300 = vunpack.c.l.b16 %v240
        %v301 = vpack.c.b16 %v286, %v285
        %v302 = vpack.c.b16 %v288, %v287
        %v303 = vpack.c.b16 %v290, %v289
        %v304 = vpack.c.b16 %v292, %v291
        %v305 = vpack.c.b16 %v294, %v293
        %v306 = vpack.c.b16 %v296, %v295
        %v307 = vpack.c.b16 %v298, %v297
        %v308 = vpack.c.b16 %v300, %v299
        %v333 = vunpack.c.l.b16 %v241
        %v334 = vunpack.c.h.b16 %v241
        %v335 = vunpack.c.l.b16 %v242
        %v336 = vunpack.c.h.b16 %v242
        %v337 = vunpack.c.l.b16 %v243
        %v338 = vunpack.c.h.b16 %v243
        %v339 = vunpack.c.l.b16 %v244
        %v340 = vunpack.c.h.b16 %v244
        %v341 = vunpack.c.l.b16 %v245
        %v342 = vunpack.c.h.b16 %v245
        %v343 = vunpack.c.l.b16 %v246
        %v344 = vunpack.c.h.b16 %v246
        %v345 = vunpack.c.l.b16 %v247
        %v346 = vunpack.c.h.b16 %v247
        %v347 = vunpack.c.l.b16 %v248
        %v348 = vunpack.c.h.b16 %v248
        %v349 = vunpack.c.l.b16 %v249
        %v350 = vunpack.c.h.b16 %v249
        %v351 = vunpack.c.l.b16 %v250
        %v352 = vunpack.c.h.b16 %v250
        %v353 = vunpack.c.l.b16 %v251
        %v354 = vunpack.c.h.b16 %v251
        %v355 = vunpack.c.l.b16 %v252
        %v356 = vunpack.c.h.b16 %v252
        %v357 = vunpack.c.l.b16 %v253
        %v358 = vunpack.c.h.b16 %v253
        %v359 = vunpack.c.l.b16 %v254
        %v360 = vunpack.c.h.b16 %v254
        %v361 = vunpack.c.l.b16 %v255
        %v362 = vunpack.c.h.b16 %v255
        %v363 = vunpack.c.l.b16 %v256
        %v364 = vunpack.c.h.b16 %v256
        %v365 = vpack.c.b16 %v335, %v333
        %v366 = vpack.c.b16 %v336, %v334
        %v367 = vpack.c.b16 %v339, %v337
        %v368 = vpack.c.b16 %v340, %v338
        %v369 = vpack.c.b16 %v343, %v341
        %v370 = vpack.c.b16 %v344, %v342
        %v371 = vpack.c.b16 %v347, %v345
        %v372 = vpack.c.b16 %v348, %v346
        %v373 = vpack.c.b16 %v351, %v349
        %v374 = vpack.c.b16 %v352, %v350
        %v375 = vpack.c.b16 %v355, %v353
        %v376 = vpack.c.b16 %v356, %v354
        %v377 = vpack.c.b16 %v359, %v357
        %v378 = vpack.c.b16 %v360, %v358
        %v379 = vpack.c.b16 %v363, %v361
        %v380 = vpack.c.b16 %v364, %v362
        %397 = vmatprep.subr.bf16.mxu0 %v380
        %398 = vmatpush1.bf16.msra.mxu0 %v379
        %399 = vmatprep.subr.bf16.mxu0 %v378
        %400 = vmatpush1.bf16.msra.mxu0 %v377
        %401 = vmatprep.subr.bf16.mxu0 %v376
        %402 = vmatpush1.bf16.msra.mxu0 %v375
        %403 = vmatprep.subr.bf16.mxu0 %v374
        %404 = vmatpush1.bf16.msra.mxu0 %v373
        %405 = vmatprep.subr.bf16.mxu0 %v372
        %406 = vmatpush1.bf16.msra.mxu0 %v371
        %407 = vmatprep.subr.bf16.mxu0 %v370
        %408 = vmatpush1.bf16.msra.mxu0 %v369
        %409 = vmatprep.subr.bf16.mxu0 %v368
        %410 = vmatpush1.bf16.msra.mxu0 %v367
        %411 = vmatprep.subr.bf16.mxu0 %v366
        %412 = vmatpush1.bf16.msra.mxu0 %v365
        %413 = vmatprep.subr.bf16.mxu0 0
        %414 = vmatpush2.bf16.msra.mxu0 0
        %415 = vmatprep.subr.bf16.mxu0 0
        %416 = vmatpush2.bf16.msra.mxu0 0
        %417 = vmatprep.subr.bf16.mxu0 0
        %418 = vmatpush2.bf16.msra.mxu0 0
        %419 = vmatprep.subr.bf16.mxu0 0
        %420 = vmatpush2.bf16.msra.mxu0 0
        %421 = vmatprep.subr.bf16.mxu0 0
        %422 = vmatpush2.bf16.msra.mxu0 0
        %423 = vmatprep.subr.bf16.mxu0 0
        %424 = vmatpush2.bf16.msra.mxu0 0
        %425 = vmatprep.subr.bf16.mxu0 0
        %426 = vmatpush2.bf16.msra.mxu0 0
        %427 = vmatprep.subr.bf16.mxu0 0
        %428 = vmatpush2.bf16.msra.mxu0 0
        %429 = vmatprep.mubr.bf16.mxu0 0
        %430 = vmatmul.mubr.bf16.gmra.mxu0 %v301
        %v431 = vpop.f32.mrf.mxu0
        %v432 = vadd.f32 %v262, %v431
        %v433 = vpop.f32.mrf.mxu0
        %v434 = vadd.f32 %v266, %v433
        %v435 = vpop.f32.mrf.mxu0
        %v436 = vadd.f32 %v262, %v435
        %v437 = vpop.f32.mrf.mxu0
        %v438 = vadd.f32 %v266, %v437
        %439 = vmatprep.mubr.bf16.mxu0 0
        %440 = vmatmul.mubr.bf16.gmra.mxu0 %v302
        %v441 = vpop.f32.mrf.mxu0
        %v442 = vadd.f32 %v262, %v441
        %v443 = vpop.f32.mrf.mxu0
        %v444 = vadd.f32 %v266, %v443
        %v445 = vpop.f32.mrf.mxu0
        %v446 = vadd.f32 %v262, %v445
        %v447 = vpop.f32.mrf.mxu0
        %v448 = vadd.f32 %v266, %v447
        %449 = vmatprep.mubr.bf16.mxu0 0
        %450 = vmatmul.mubr.bf16.gmra.mxu0 %v303
        %v451 = vpop.f32.mrf.mxu0
        %v452 = vadd.f32 %v262, %v451
        %v453 = vpop.f32.mrf.mxu0
        %v454 = vadd.f32 %v266, %v453
        %v455 = vpop.f32.mrf.mxu0
        %v456 = vadd.f32 %v262, %v455
        %v457 = vpop.f32.mrf.mxu0
        %v458 = vadd.f32 %v266, %v457
        %459 = vmatprep.mubr.bf16.mxu0 0
        %460 = vmatmul.mubr.bf16.gmra.mxu0 %v304
        %v461 = vpop.f32.mrf.mxu0
        %v462 = vadd.f32 %v262, %v461
        %v463 = vpop.f32.mrf.mxu0
        %v464 = vadd.f32 %v266, %v463
        %v465 = vpop.f32.mrf.mxu0
        %v466 = vadd.f32 %v262, %v465
        %v467 = vpop.f32.mrf.mxu0
        %v468 = vadd.f32 %v266, %v467
        %469 = vmatprep.mubr.bf16.mxu0 0
        %470 = vmatmul.mubr.bf16.gmra.mxu0 %v305
        %v471 = vpop.f32.mrf.mxu0
        %v472 = vadd.f32 %v262, %v471
        %v473 = vpop.f32.mrf.mxu0
        %v474 = vadd.f32 %v266, %v473
        %v475 = vpop.f32.mrf.mxu0
        %v476 = vadd.f32 %v262, %v475
        %v477 = vpop.f32.mrf.mxu0
        %v478 = vadd.f32 %v266, %v477
        %479 = vmatprep.mubr.bf16.mxu0 0
        %480 = vmatmul.mubr.bf16.gmra.mxu0 %v306
        %v481 = vpop.f32.mrf.mxu0
        %v482 = vadd.f32 %v262, %v481
        %v483 = vpop.f32.mrf.mxu0
        %v484 = vadd.f32 %v266, %v483
        %v485 = vpop.f32.mrf.mxu0
        %v486 = vadd.f32 %v262, %v485
        %v487 = vpop.f32.mrf.mxu0
        %v488 = vadd.f32 %v266, %v487
        %489 = vmatprep.mubr.bf16.mxu0 0
        %490 = vmatmul.mubr.bf16.gmra.mxu0 %v307
        %v491 = vpop.f32.mrf.mxu0
        %v492 = vadd.f32 %v262, %v491
        %v493 = vpop.f32.mrf.mxu0
        %v494 = vadd.f32 %v266, %v493
        %v495 = vpop.f32.mrf.mxu0
        %v496 = vadd.f32 %v262, %v495
        %v497 = vpop.f32.mrf.mxu0
        %v498 = vadd.f32 %v266, %v497
        %499 = vmatprep.mubr.bf16.mxu0 0
        %500 = vmatmul.mubr.bf16.gmra.mxu0 %v308
        %v501 = vpop.f32.mrf.mxu0
        %v502 = vadd.f32 %v262, %v501
        %v503 = vpop.f32.mrf.mxu0
        %v504 = vadd.f32 %v266, %v503
        %v505 = vpop.f32.mrf.mxu0
        %v506 = vadd.f32 %v262, %v505
        %v507 = vpop.f32.mrf.mxu0
        %v508 = vadd.f32 %v266, %v507
        %509 = vdwg.mxu0
        %v510 = vpack.c.bf16 %v436, %v432
        %v511 = vpack.c.bf16 %v438, %v434
        %v512 = vpack.c.bf16 %v446, %v442
        %v513 = vpack.c.bf16 %v448, %v444
        %v514 = vpack.c.bf16 %v456, %v452
        %v515 = vpack.c.bf16 %v458, %v454
        %v516 = vpack.c.bf16 %v466, %v462
        %v517 = vpack.c.bf16 %v468, %v464
        %v518 = vpack.c.bf16 %v476, %v472
        %v519 = vpack.c.bf16 %v478, %v474
        %v520 = vpack.c.bf16 %v486, %v482
        %v521 = vpack.c.bf16 %v488, %v484
        %v522 = vpack.c.bf16 %v496, %v492
        %v523 = vpack.c.bf16 %v498, %v494
        %v524 = vpack.c.bf16 %v506, %v502
        %v525 = vpack.c.bf16 %v508, %v504
        %v542 = vunpack.c.l.b16 %v510
        %v543 = vunpack.c.l.b16 %v511
        %v544 = vunpack.c.h.b16 %v510
        %v545 = vunpack.c.h.b16 %v511
        %v546 = vunpack.c.l.b16 %v512
        %v547 = vunpack.c.l.b16 %v513
        %v548 = vunpack.c.h.b16 %v512
        %v549 = vunpack.c.h.b16 %v513
        %v550 = vunpack.c.l.b16 %v514
        %v551 = vunpack.c.l.b16 %v515
        %v552 = vunpack.c.h.b16 %v514
        %v553 = vunpack.c.h.b16 %v515
        %v554 = vunpack.c.l.b16 %v516
        %v555 = vunpack.c.l.b16 %v517
        %v556 = vunpack.c.h.b16 %v516
        %v557 = vunpack.c.h.b16 %v517
        %v558 = vunpack.c.l.b16 %v518
        %v559 = vunpack.c.l.b16 %v519
        %v560 = vunpack.c.h.b16 %v518
        %v561 = vunpack.c.h.b16 %v519
        %v562 = vunpack.c.l.b16 %v520
        %v563 = vunpack.c.l.b16 %v521
        %v564 = vunpack.c.h.b16 %v520
        %v565 = vunpack.c.h.b16 %v521
        %v566 = vunpack.c.l.b16 %v522
        %v567 = vunpack.c.l.b16 %v523
        %v568 = vunpack.c.h.b16 %v522
        %v569 = vunpack.c.h.b16 %v523
        %v570 = vunpack.c.l.b16 %v524
        %v571 = vunpack.c.l.b16 %v525
        %v572 = vunpack.c.h.b16 %v524
        %v573 = vunpack.c.h.b16 %v525
        %v574 = vpack.c.b16 %v543, %v542
        %v575 = vpack.c.b16 %v545, %v544
        %v576 = vpack.c.b16 %v547, %v546
        %v577 = vpack.c.b16 %v549, %v548
        %v578 = vpack.c.b16 %v551, %v550
        %v579 = vpack.c.b16 %v553, %v552
        %v580 = vpack.c.b16 %v555, %v554
        %v581 = vpack.c.b16 %v557, %v556
        %v582 = vpack.c.b16 %v559, %v558
        %v583 = vpack.c.b16 %v561, %v560
        %v584 = vpack.c.b16 %v563, %v562
        %v585 = vpack.c.b16 %v565, %v564
        %v586 = vpack.c.b16 %v567, %v566
        %v587 = vpack.c.b16 %v569, %v568
        %v588 = vpack.c.b16 %v571, %v570
        %v589 = vpack.c.b16 %v573, %v572
        %606 = vst [vmem:[%s221] sm:$0xff] %v574
        %607 = vst [vmem:[%s221 + $0x8] sm:$0xff] %v575
        %608 = vst [vmem:[%s221 + $0x10] sm:$0xff] %v576
        %609 = vst [vmem:[%s221 + $0x18] sm:$0xff] %v577
        %610 = vst [vmem:[%s221 + $0x20] sm:$0xff] %v578
        %611 = vst [vmem:[%s221 + $0x28] sm:$0xff] %v579
        %612 = vst [vmem:[%s221 + $0x30] sm:$0xff] %v580
        %613 = vst [vmem:[%s221 + $0x38] sm:$0xff] %v581
        %614 = vst [vmem:[%s221 + $0x40] sm:$0xff] %v582
        %615 = vst [vmem:[%s221 + $0x48] sm:$0xff] %v583
        %616 = vst [vmem:[%s221 + $0x50] sm:$0xff] %v584
        %617 = vst [vmem:[%s221 + $0x58] sm:$0xff] %v585
        %618 = vst [vmem:[%s221 + $0x60] sm:$0xff] %v586
        %619 = vst [vmem:[%s221 + $0x68] sm:$0xff] %v587
        %620 = vst [vmem:[%s221 + $0x70] sm:$0xff] %v588
        %621 = vst [vmem:[%s221 + $0x78] sm:$0xff] %v589
        %s622 = sand.u32 %s113, 1
        %s623 = scalar_lea.sflag [#allocation4], %s622
        %s624 = sand.u32 %s113, 1
        %s625 = smul.addr %s624, 128
        %s626 = scalar_lea.vmem [#allocation7], %s625
        // Predicated region
        $region41: #{tpu_custom_call.1} parent=31 // pred_check
          %p627 = pneg %p123
        $region42: #{tpu_custom_call.1} parent=31 // pred_check_branch
          %629 = sbr.rel (%p627) target = $region44
        $region43: #{tpu_custom_call.1} parent=31 // pred_region
          %s630 = smul.u32 16, %s26
          %s632 = ssub.s32 2048, 2048
          %633 = vsyncadd %s623, %s632
          %s634 = smul.addr %s630, 2
          %s635 = smul.addr %s25, 32
          %s636 = sadd.s32 %s634, %s635
          %s637 = smul.addr %s636, 64
          %s638 = scalar_lea.hbm %s3, %s637
          %s639 = sshll.u32 %s626, 4
          %s640 = int_to_ptr.vmem [resolvable:$true] %s639
          %645 = dma.vmem_to_hbm [thread:$0]  %s640, 2048, %s638, %s623, 128, 128, 8
        $region44: #{tpu_custom_call.1} parent=31 // pred_fallthru
          _
      $region32: #{tpu_custom_call.1} parent=5 // pred_fallthru
        _
      %p646 = scmp.le.s32.totalorder 2, %s16
      // Predicated region
      $region45: #{tpu_custom_call.1} parent=5 // pred_check
        %p647 = pneg %p646
      $region46: #{tpu_custom_call.1} parent=5 // pred_check_branch
        %649 = sbr.rel (%p647) target = $region48
      $region47: #{tpu_custom_call.1} parent=5 // pred_region
        %s650 = ssub.s32 %s16, 2
        // Predicated region
        $region49: #{tpu_custom_call.1} parent=47 // pred_check
          %p651 = pneg %p129
        $region50: #{tpu_custom_call.1} parent=47 // pred_check_branch
          %653 = sbr.rel (%p651) target = $region52
        $region51: #{tpu_custom_call.1} parent=47 // pred_region
          %s654 = sand.u32 %s114, 1
          %s655 = scalar_lea.sflag [#allocation4], %s654
          %s656 = sand.u32 %s114, 1
          %s657 = smul.addr %s656, 128
          %s658 = scalar_lea.vmem [#allocation7], %s657
          %659 = dma.done %s655, 2048
        $region52: #{tpu_custom_call.1} parent=47 // pred_fallthru
          _
      $region48: #{tpu_custom_call.1} parent=5 // pred_fallthru
        _
    $region6: #{tpu_custom_call.1} parent=1 // loop_footer
      %s20 = sadd.s32 1, %s16
    $region7: #{tpu_custom_call.1} parent=1 // loop_footer_branch
      %15 = sbr.rel target = $region3
    $region8: #{tpu_custom_call.1} parent=1 // loop_exit
      _
    %660 = vsyncpa [#allocation3], 1
    %s661 = scalar_lea.sflag [#allocation3], 1
    %662 = vsyncpa %s661, 1
    %663 = vsyncpa [#allocation6], 1
    %664 = vsyncpa [#allocation4], 1
    %s665 = scalar_lea.sflag [#allocation4], 1
    %666 = vsyncpa %s665, 1

// kernel: tpu_custom_call.1
$region0: #{tpu_custom_call.1}
  #allocation0 [shape = 'u32[]', space=smem, size = 0x4, offset = 0x4, fixed_abs, tag = 'smem constant byte address 0x4 - core index']
  #allocation1 [shape = 'u32[144,128]{1,0:T(1,128)}', space=vmem, size = 0x12000, scoped, tag = 'internal scratch']
  %s0 = inlined_call_operand.hbm [shape: bf16[2,128,128], index: 0, kind: input, shape index: {}]
  %s1 = inlined_call_operand.hbm [shape: bf16[128,256], index: 1, kind: input, shape index: {}]
  %s2 = inlined_call_operand.vmem [shape: f32[1,256], index: 2, kind: input, shape index: {}]
  %s3 = inlined_call_operand.hbm [shape: bf16[2,128,256], index: 3, kind: output, shape index: {}]
  %s4 = sld [smem:[#allocation0]]
  $region53: #{tpu_custom_call.1} parent=0
    _
  %s6 = ssub.s32 1, %s4
  %s7 = scalar_select 0, %s6, %s4
  $region1: #{tpu_custom_call.1} parent=0
    #allocation2 [shape = 'u8[65536]{0}', space=vmem, size = 0x10000, scoped, tag = 'input window, operand 0']
    #allocation3 [shape = 's32[2]{0}', space=sflag, size = 0x8, scoped, tag = 'scoped memory for tpu_custom_call.1']
    #allocation4 [shape = 's32[2]{0}', space=sflag, size = 0x8, scoped, tag = 'scoped memory for tpu_custom_call.1']
    #allocation5 [shape = 'u8[65536]{0}', space=vmem, size = 0x10000, scoped, tag = 'input window, operand 1, single buffered']
    #allocation6 [shape = 's32[1]{0}', space=sflag, size = 0x4, scoped, tag = 'scoped memory for tpu_custom_call.1']
    #allocation7 [shape = 'u8[131072]{0}', space=vmem, size = 0x20000, scoped, tag = 'output window, operand 0']
    %8 = vsyncpa [#allocation3], 0
    %s9 = scalar_lea.sflag [#allocation3], 1
    %10 = vsyncpa %s9, 0
    %11 = vsyncpa [#allocation6], 0
    %12 = vsyncpa [#allocation4], 0
    %s13 = scalar_lea.sflag [#allocation4], 1
    %14 = vsyncpa %s13, 0
    loop: start=0, step=1, limit=4
    $region2: #{tpu_custom_call.1} parent=1 // loop_pre_header
      _
    $region3: #{tpu_custom_call.1} parent=1 // loop_header
      %s16 = sphi 0, %s20
      %p17 = scmp.ge.s32.totalorder %s16, 4
      %s23 = sphi 0, %s35
      %s24 = sphi 0, %s31
      %s25 = sphi 0, %s23
      %s26 = sphi 0, %s24
      %s27 = sphi 0, %s25
      %s28 = sphi 0, %s26
      %s40 = sphi 0, %s42
      %s43 = sphi 0, %s40
      %s44 = sphi 0, %s43
      %s60 = sphi 0, %s44
      %s64 = sphi 0, %s64
      %s66 = sphi 0, %s64
      %s67 = sphi 0, %s66
      %s81 = sphi 0, %s67
      %s85 = sphi 0, %s85
      %s87 = sphi 0, %s85
      %s88 = sphi 0, %s87
      %s102 = sphi 0, %s88
      %s110 = sphi 0, %s112
      %s113 = sphi 0, %s110
      %s114 = sphi 0, %s113
      %s130 = sphi 0, %s114
    $region4: #{tpu_custom_call.1} parent=1 // loop_header_branch
      %19 = sbr.rel (%p17) target = $region8
    $region5: #{tpu_custom_call.1} parent=1 // loop_body
      %s21 = ssub.s32 %s16, 1
      %s22 = ssub.s32 %s16, 2
      %s29 = sadd.s32 1, %s24
      %p30 = scmp.ge.s32.totalorder %s29, 1
      %s31 = scalar_select %p30, 0, %s29
      %s32 = sadd.s32 1, %s23
      %s33 = scalar_select %p30, %s32, %s23
      %p34 = scmp.ge.s32.totalorder %s33, 2
      %s35 = scalar_select %p34, 0, %s33
      %s36 = ssub.s32 %s23, %s35
      %s37 = ssub.s32 %s24, %s31
      %s38 = sor.u32 %s36, %s37
      %p39 = scmp.eq.s32.totalorder %s38, 0
      %s41 = sadd.s32 %s40, 1
      %s42 = scalar_select %p39, %s40, %s41
      %p45 = pneg %p39
      %p46 = scmp.eq.s32.totalorder %s16, 1
      %p47 = por %p45, %p46
      %p48 = scmp.ne.s32.totalorder %s40, %s43
      %p49 = scmp.eq.s32.totalorder %s16, 0
      %p50 = por %p48, %p49
      %p51 = scmp.ne.s32.totalorder %s40, %s43
      %p52 = scmp.eq.s32.totalorder %s21, 1
      %p53 = por %p51, %p52
      %p54 = scmp.ne.s32.totalorder %s43, %s44
      %p55 = scmp.eq.s32.totalorder %s21, 0
      %p56 = por %p54, %p55
      %p57 = scmp.ne.s32.totalorder %s43, %s44
      %p58 = scmp.eq.s32.totalorder %s22, 1
      %p59 = por %p57, %p58
      %p61 = scmp.ne.s32.totalorder %s44, %s60
      %p62 = scmp.eq.s32.totalorder %s22, 0
      %p63 = por %p61, %p62
      %s65 = sadd.s32 %s64, 1
      %p68 = scmp.eq.s32.totalorder %s16, 1
      %p69 = scmp.ne.s32.totalorder %s64, %s66
      %p70 = scmp.eq.s32.totalorder %s16, 0
      %p71 = por %p69, %p70
      %p72 = scmp.ne.s32.totalorder %s64, %s66
      %p73 = scmp.eq.s32.totalorder %s21, 1
      %p74 = por %p72, %p73
      %p75 = scmp.ne.s32.totalorder %s66, %s67
      %p76 = scmp.eq.s32.totalorder %s21, 0
      %p77 = por %p75, %p76
      %p78 = scmp.ne.s32.totalorder %s66, %s67
      %p79 = scmp.eq.s32.totalorder %s22, 1
      %p80 = por %p78, %p79
      %p82 = scmp.ne.s32.totalorder %s67, %s81
      %p83 = scmp.eq.s32.totalorder %s22, 0
      %p84 = por %p82, %p83
      %s86 = sadd.s32 %s85, 1
      %p89 = scmp.eq.s32.totalorder %s16, 1
      %p90 = scmp.ne.s32.totalorder %s85, %s87
      %p91 = scmp.eq.s32.totalorder %s16, 0
      %p92 = por %p90, %p91
      %p93 = scmp.ne.s32.totalorder %s85, %s87
      %p94 = scmp.eq.s32.totalorder %s21, 1
      %p95 = por %p93, %p94
      %p96 = scmp.ne.s32.totalorder %s87, %s88
      %p97 = scmp.eq.s32.totalorder %s21, 0
      %p98 = por %p96, %p97
      %p99 = scmp.ne.s32.totalorder %s87, %s88
      %p100 = scmp.eq.s32.totalorder %s22, 1
      %p101 = por %p99, %p100
      %p103 = scmp.ne.s32.totalorder %s88, %s102
      %p104 = scmp.eq.s32.totalorder %s22, 0
      %p105 = por %p103, %p104
      %s106 = ssub.s32 %s23, %s35
      %s107 = ssub.s32 %s24, %s31
      %s108 = sor.u32 %s106, %s107
      %p109 = scmp.eq.s32.totalorder %s108, 0
      %s111 = sadd.s32 %s110, 1
      %s112 = scalar_select %p109, %s110, %s111
      %p115 = pneg %p109
      %p116 = scmp.eq.s32.totalorder %s16, 1
      %p117 = por %p115, %p116
      %p118 = scmp.ne.s32.totalorder %s110, %s113
      %p119 = scmp.eq.s32.totalorder %s16, 0
      %p120 = por %p118, %p119
      %p121 = scmp.ne.s32.totalorder %s110, %s113
      %p122 = scmp.eq.s32.totalorder %s21, 1
      %p123 = por %p121, %p122
      %p124 = scmp.ne.s32.totalorder %s113, %s114
      %p125 = scmp.eq.s32.totalorder %s21, 0
      %p126 = por %p124, %p125
      %p127 = scmp.ne.s32.totalorder %s113, %s114
      %p128 = scmp.eq.s32.totalorder %s22, 1
      %p129 = por %p127, %p128
      %p131 = scmp.ne.s32.totalorder %s114, %s130
      %p132 = scmp.eq.s32.totalorder %s22, 0
      %p133 = por %p131, %p132
      %p134 = scmp.le.s32.totalorder 1, %s16
      %p135 = scmp.lt.s32.totalorder %s16, 3
      %p136 = pnand %p134, %p135
      %p137 = pneg %p136
      // Predicated region
      $region9: #{tpu_custom_call.1} parent=5 // pred_check
        _
      $region10: #{tpu_custom_call.1} parent=5 // pred_check_branch
        %139 = sbr.rel (%p136) target = $region12
      $region11: #{tpu_custom_call.1} parent=5 // pred_region
        %s140 = ssub.s32 %s16, 1
        // Predicated region
        $region13: #{tpu_custom_call.1} parent=11 // pred_check
          %p141 = pneg %p77
        $region14: #{tpu_custom_call.1} parent=11 // pred_check_branch
          %143 = sbr.rel (%p141) target = $region16
        $region15: #{tpu_custom_call.1} parent=11 // pred_region
          %s145 = ssub.s32 2048, 2048
          %146 = vsyncadd [#allocation6], %s145
          %s147 = sshll.u32 [#allocation5], 4
          %s148 = int_to_ptr.vmem [resolvable:$true] %s147
          %153 = dma.hbm_to_vmem [thread:$0]  %s1, 2048, %s148, [#allocation6], 128, 128, 8
        $region16: #{tpu_custom_call.1} parent=11 // pred_fallthru
          _
        // Predicated region
        $region17: #{tpu_custom_call.1} parent=11 // pred_check
          %p154 = pneg %p98
        $region18: #{tpu_custom_call.1} parent=11 // pred_check_branch
          %156 = sbr.rel (%p154) target = $region20
        $region19: #{tpu_custom_call.1} parent=11 // pred_region
          _
        $region20: #{tpu_custom_call.1} parent=11 // pred_fallthru
          _
      $region12: #{tpu_custom_call.1} parent=5 // pred_fallthru
        _
      %p157 = scmp.lt.s32.totalorder %s16, 2
      // Predicated region
      $region21: #{tpu_custom_call.1} parent=5 // pred_check
        %p158 = pneg %p157
      $region22: #{tpu_custom_call.1} parent=5 // pred_check_branch
        %160 = sbr.rel (%p158) target = $region24
      $region23: #{tpu_custom_call.1} parent=5 // pred_region
        // Predicated region
        $region25: #{tpu_custom_call.1} parent=23 // pred_check
          %p161 = pneg %p50
        $region26: #{tpu_custom_call.1} parent=23 // pred_check_branch
          %163 = sbr.rel (%p161) target = $region28
        $region27: #{tpu_custom_call.1} parent=23 // pred_region
          %s164 = sand.u32 %s40, 1
          %s165 = scalar_lea.sflag [#allocation3], %s164
          %s166 = sand.u32 %s40, 1
          %s167 = smul.addr %s166, 64
          %s168 = scalar_lea.vmem [#allocation2], %s167
          %s169 = smul.u32 16, %s24
          %s171 = ssub.s32 1024, 1024
          %172 = vsyncadd %s165, %s171
          %s173 = smul.addr %s23, 16
          %s174 = sadd.s32 %s169, %s173
          %s175 = smul.addr %s174, 64
          %s176 = scalar_lea.hbm %s0, %s175
          %s177 = sshll.u32 %s168, 4
          %s178 = int_to_ptr.vmem [resolvable:$true] %s177
          %183 = dma.hbm_to_vmem [thread:$0]  %s176, 1024, %s178, %s165, 64, 64, 4
        $region28: #{tpu_custom_call.1} parent=23 // pred_fallthru
          _
      $region24: #{tpu_custom_call.1} parent=5 // pred_fallthru
        _
      %p184 = scmp.le.s32.totalorder 1, %s16
      %p185 = scmp.lt.s32.totalorder %s16, 3
      %p186 = pnand %p184, %p185
      %p187 = pneg %p186
      // Predicated region
      $region29: #{tpu_custom_call.1} parent=5 // pred_check
        _
      $region30: #{tpu_custom_call.1} parent=5 // pred_check_branch
        %189 = sbr.rel (%p186) target = $region32
      $region31: #{tpu_custom_call.1} parent=5 // pred_region
        %s190 = ssub.s32 %s16, 1
        %s191 = sand.u32 %s43, 1
        %s192 = scalar_lea.sflag [#allocation3], %s191
        %s193 = sand.u32 %s43, 1
        %s194 = smul.addr %s193, 64
        %s195 = scalar_lea.vmem [#allocation2], %s194
        // Predicated region
        $region33: #{tpu_custom_call.1} parent=31 // pred_check
          %p196 = pneg %p56
        $region34: #{tpu_custom_call.1} parent=31 // pred_check_branch
          %198 = sbr.rel (%p196) target = $region36
        $region35: #{tpu_custom_call.1} parent=31 // pred_region
          %199 = dma.done %s192, 1024
        $region36: #{tpu_custom_call.1} parent=31 // pred_fallthru
          _
        // Predicated region
        $region37: #{tpu_custom_call.1} parent=31 // pred_check
          %p200 = pneg %p77
        $region38: #{tpu_custom_call.1} parent=31 // pred_check_branch
          %202 = sbr.rel (%p200) target = $region40
        $region39: #{tpu_custom_call.1} parent=31 // pred_region
          %203 = dma.done [#allocation6], 2048
        $region40: #{tpu_custom_call.1} parent=31 // pred_fallthru
          _
        %s204 = sand.u32 %s43, 1
        %s205 = scalar_lea.sflag [#allocation3], %s204
        %s206 = sand.u32 %s43, 1
        %s207 = smul.addr %s206, 64
        %s208 = scalar_lea.vmem [#allocation2], %s207
        %p209 = pneg %p56
        %p210 = pneg %p53
        %p211 = pneg %p77
        %p212 = pneg %p74
        %p213 = pneg %p98
        %p214 = pneg %p95
        %p215 = pneg %p126
        %p216 = pneg %p123
        %s217 = sand.u32 %s113, 1
        %s218 = scalar_lea.sflag [#allocation4], %s217
        %s219 = sand.u32 %s113, 1
        %s220 = smul.addr %s219, 128
        %s221 = scalar_lea.vmem [#allocation7], %s220
        %s222 = smul.u32 16, %s26
        %s223 = smul.u32 16, %s26
        %v225 = vld [vmem:[%s195] sm:$0xf]
        %v226 = vld [vmem:[%s195 + $0x4] sm:$0xf]
        %v227 = vld [vmem:[%s195 + $0x8] sm:$0xf]
        %v228 = vld [vmem:[%s195 + $0xc] sm:$0xf]
        %v229 = vld [vmem:[%s195 + $0x10] sm:$0xf]
        %v230 = vld [vmem:[%s195 + $0x14] sm:$0xf]
        %v231 = vld [vmem:[%s195 + $0x18] sm:$0xf]
        %v232 = vld [vmem:[%s195 + $0x1c] sm:$0xf]
        %v233 = vld [vmem:[%s195 + $0x20] sm:$0xf]
        %v234 = vld [vmem:[%s195 + $0x24] sm:$0xf]
        %v235 = vld [vmem:[%s195 + $0x28] sm:$0xf]
        %v236 = vld [vmem:[%s195 + $0x2c] sm:$0xf]
        %v237 = vld [vmem:[%s195 + $0x30] sm:$0xf]
        %v238 = vld [vmem:[%s195 + $0x34] sm:$0xf]
        %v239 = vld [vmem:[%s195 + $0x38] sm:$0xf]
        %v240 = vld [vmem:[%s195 + $0x3c] sm:$0xf]
        %v241 = vld [vmem:[#allocation5] sm:$0xff]
        %v242 = vld [vmem:[#allocation5 + $0x8] sm:$0xff]
        %v243 = vld [vmem:[#allocation5 + $0x10] sm:$0xff]
        %v244 = vld [vmem:[#allocation5 + $0x18] sm:$0xff]
        %v245 = vld [vmem:[#allocation5 + $0x20] sm:$0xff]
        %v246 = vld [vmem:[#allocation5 + $0x28] sm:$0xff]
        %v247 = vld [vmem:[#allocation5 + $0x30] sm:$0xff]
        %v248 = vld [vmem:[#allocation5 + $0x38] sm:$0xff]
        %v249 = vld [vmem:[#allocation5 + $0x40] sm:$0xff]
        %v250 = vld [vmem:[#allocation5 + $0x48] sm:$0xff]
        %v251 = vld [vmem:[#allocation5 + $0x50] sm:$0xff]
        %v252 = vld [vmem:[#allocation5 + $0x58] sm:$0xff]
        %v253 = vld [vmem:[#allocation5 + $0x60] sm:$0xff]
        %v254 = vld [vmem:[#allocation5 + $0x68] sm:$0xff]
        %v255 = vld [vmem:[#allocation5 + $0x70] sm:$0xff]
        %v256 = vld [vmem:[#allocation5 + $0x78] sm:$0xff]
        %v257 = vld [vmem:[%s2] sm:$0x3]
        %v259 = vlaneseq
        %v260 = vshrl.u32 %v259, 7
        %v261 = vsub.s32 0, %v260
        %v262 = vrot.slane %v257, %v261
        %v263 = vlaneseq
        %v264 = vshrl.u32 %v263, 7
        %v265 = vsub.s32 1, %v264
        %v266 = vrot.slane %v257, %v265
        %v285 = vunpack.c.l.b16 %v225
        %v286 = vunpack.c.l.b16 %v226
        %v287 = vunpack.c.l.b16 %v227
        %v288 = vunpack.c.l.b16 %v228
        %v289 = vunpack.c.l.b16 %v229
        %v290 = vunpack.c.l.b16 %v230
        %v291 = vunpack.c.l.b16 %v231
        %v292 = vunpack.c.l.b16 %v232
        %v293 = vunpack.c.l.b16 %v233
        %v294 = vunpack.c.l.b16 %v234
        %v295 = vunpack.c.l.b16 %v235
        %v296 = vunpack.c.l.b16 %v236
        %v297 = vunpack.c.l.b16 %v237
        %v298 = vunpack.c.l.b16 %v238
        %v299 = vunpack.c.l.b16 %v239
        %v300 = vunpack.c.l.b16 %v240
        %v301 = vpack.c.b16 %v286, %v285
        %v302 = vpack.c.b16 %v288, %v287
        %v303 = vpack.c.b16 %v290, %v289
        %v304 = vpack.c.b16 %v292, %v291
        %v305 = vpack.c.b16 %v294, %v293
        %v306 = vpack.c.b16 %v296, %v295
        %v307 = vpack.c.b16 %v298, %v297
        %v308 = vpack.c.b16 %v300, %v299
        %v333 = vunpack.c.l.b16 %v241
        %v334 = vunpack.c.h.b16 %v241
        %v335 = vunpack.c.l.b16 %v242
        %v336 = vunpack.c.h.b16 %v242
        %v337 = vunpack.c.l.b16 %v243
        %v338 = vunpack.c.h.b16 %v243
        %v339 = vunpack.c.l.b16 %v244
        %v340 = vunpack.c.h.b16 %v244
        %v341 = vunpack.c.l.b16 %v245
        %v342 = vunpack.c.h.b16 %v245
        %v343 = vunpack.c.l.b16 %v246
        %v344 = vunpack.c.h.b16 %v246
        %v345 = vunpack.c.l.b16 %v247
        %v346 = vunpack.c.h.b16 %v247
        %v347 = vunpack.c.l.b16 %v248
        %v348 = vunpack.c.h.b16 %v248
        %v349 = vunpack.c.l.b16 %v249
        %v350 = vunpack.c.h.b16 %v249
        %v351 = vunpack.c.l.b16 %v250
        %v352 = vunpack.c.h.b16 %v250
        %v353 = vunpack.c.l.b16 %v251
        %v354 = vunpack.c.h.b16 %v251
        %v355 = vunpack.c.l.b16 %v252
        %v356 = vunpack.c.h.b16 %v252
        %v357 = vunpack.c.l.b16 %v253
        %v358 = vunpack.c.h.b16 %v253
        %v359 = vunpack.c.l.b16 %v254
        %v360 = vunpack.c.h.b16 %v254
        %v361 = vunpack.c.l.b16 %v255
        %v362 = vunpack.c.h.b16 %v255
        %v363 = vunpack.c.l.b16 %v256
        %v364 = vunpack.c.h.b16 %v256
        %v365 = vpack.c.b16 %v335, %v333
        %v366 = vpack.c.b16 %v336, %v334
        %v367 = vpack.c.b16 %v339, %v337
        %v368 = vpack.c.b16 %v340, %v338
        %v369 = vpack.c.b16 %v343, %v341
        %v370 = vpack.c.b16 %v344, %v342
        %v371 = vpack.c.b16 %v347, %v345
        %v372 = vpack.c.b16 %v348, %v346
        %v373 = vpack.c.b16 %v351, %v349
        %v374 = vpack.c.b16 %v352, %v350
        %v375 = vpack.c.b16 %v355, %v353
        %v376 = vpack.c.b16 %v356, %v354
        %v377 = vpack.c.b16 %v359, %v357
        %v378 = vpack.c.b16 %v360, %v358
        %v379 = vpack.c.b16 %v363, %v361
        %v380 = vpack.c.b16 %v364, %v362
        %397 = vmatprep.subr.bf16.mxu0 %v380
        %398 = vmatpush1.bf16.msra.mxu0 %v379
        %399 = vmatprep.subr.bf16.mxu0 %v378
        %400 = vmatpush1.bf16.msra.mxu0 %v377
        %401 = vmatprep.subr.bf16.mxu0 %v376
        %402 = vmatpush1.bf16.msra.mxu0 %v375
        %403 = vmatprep.subr.bf16.mxu0 %v374
        %404 = vmatpush1.bf16.msra.mxu0 %v373
        %405 = vmatprep.subr.bf16.mxu0 %v372
        %406 = vmatpush1.bf16.msra.mxu0 %v371
        %407 = vmatprep.subr.bf16.mxu0 %v370
        %408 = vmatpush1.bf16.msra.mxu0 %v369
        %409 = vmatprep.subr.bf16.mxu0 %v368
        %410 = vmatpush1.bf16.msra.mxu0 %v367
        %411 = vmatprep.subr.bf16.mxu0 %v366
        %412 = vmatpush1.bf16.msra.mxu0 %v365
        %413 = vmatprep.subr.bf16.mxu0 0
        %414 = vmatpush2.bf16.msra.mxu0 0
        %415 = vmatprep.subr.bf16.mxu0 0
        %416 = vmatpush2.bf16.msra.mxu0 0
        %417 = vmatprep.subr.bf16.mxu0 0
        %418 = vmatpush2.bf16.msra.mxu0 0
        %419 = vmatprep.subr.bf16.mxu0 0
        %420 = vmatpush2.bf16.msra.mxu0 0
        %421 = vmatprep.subr.bf16.mxu0 0
        %422 = vmatpush2.bf16.msra.mxu0 0
        %423 = vmatprep.subr.bf16.mxu0 0
        %424 = vmatpush2.bf16.msra.mxu0 0
        %425 = vmatprep.subr.bf16.mxu0 0
        %426 = vmatpush2.bf16.msra.mxu0 0
        %427 = vmatprep.subr.bf16.mxu0 0
        %428 = vmatpush2.bf16.msra.mxu0 0
        %429 = vmatprep.mubr.bf16.mxu0 0
        %430 = vmatmul.mubr.bf16.gmra.mxu0 %v301
        %v431 = vpop.f32.mrf.mxu0
        %v432 = vadd.f32 %v262, %v431
        %v433 = vpop.f32.mrf.mxu0
        %v434 = vadd.f32 %v266, %v433
        %v435 = vpop.f32.mrf.mxu0
        %v436 = vadd.f32 %v262, %v435
        %v437 = vpop.f32.mrf.mxu0
        %v438 = vadd.f32 %v266, %v437
        %439 = vmatprep.mubr.bf16.mxu0 0
        %440 = vmatmul.mubr.bf16.gmra.mxu0 %v302
        %v441 = vpop.f32.mrf.mxu0
        %v442 = vadd.f32 %v262, %v441
        %v443 = vpop.f32.mrf.mxu0
        %v444 = vadd.f32 %v266, %v443
        %v445 = vpop.f32.mrf.mxu0
        %v446 = vadd.f32 %v262, %v445
        %v447 = vpop.f32.mrf.mxu0
        %v448 = vadd.f32 %v266, %v447
        %449 = vmatprep.mubr.bf16.mxu0 0
        %450 = vmatmul.mubr.bf16.gmra.mxu0 %v303
        %v451 = vpop.f32.mrf.mxu0
        %v452 = vadd.f32 %v262, %v451
        %v453 = vpop.f32.mrf.mxu0
        %v454 = vadd.f32 %v266, %v453
        %v455 = vpop.f32.mrf.mxu0
        %v456 = vadd.f32 %v262, %v455
        %v457 = vpop.f32.mrf.mxu0
        %v458 = vadd.f32 %v266, %v457
        %459 = vmatprep.mubr.bf16.mxu0 0
        %460 = vmatmul.mubr.bf16.gmra.mxu0 %v304
        %v461 = vpop.f32.mrf.mxu0
        %v462 = vadd.f32 %v262, %v461
        %v463 = vpop.f32.mrf.mxu0
        %v464 = vadd.f32 %v266, %v463
        %v465 = vpop.f32.mrf.mxu0
        %v466 = vadd.f32 %v262, %v465
        %v467 = vpop.f32.mrf.mxu0
        %v468 = vadd.f32 %v266, %v467
        %469 = vmatprep.mubr.bf16.mxu0 0
        %470 = vmatmul.mubr.bf16.gmra.mxu0 %v305
        %v471 = vpop.f32.mrf.mxu0
        %v472 = vadd.f32 %v262, %v471
        %v473 = vpop.f32.mrf.mxu0
        %v474 = vadd.f32 %v266, %v473
        %v475 = vpop.f32.mrf.mxu0
        %v476 = vadd.f32 %v262, %v475
        %v477 = vpop.f32.mrf.mxu0
        %v478 = vadd.f32 %v266, %v477
        %479 = vmatprep.mubr.bf16.mxu0 0
        %480 = vmatmul.mubr.bf16.gmra.mxu0 %v306
        %v481 = vpop.f32.mrf.mxu0
        %v482 = vadd.f32 %v262, %v481
        %v483 = vpop.f32.mrf.mxu0
        %v484 = vadd.f32 %v266, %v483
        %v485 = vpop.f32.mrf.mxu0
        %v486 = vadd.f32 %v262, %v485
        %v487 = vpop.f32.mrf.mxu0
        %v488 = vadd.f32 %v266, %v487
        %489 = vmatprep.mubr.bf16.mxu0 0
        %490 = vmatmul.mubr.bf16.gmra.mxu0 %v307
        %v491 = vpop.f32.mrf.mxu0
        %v492 = vadd.f32 %v262, %v491
        %v493 = vpop.f32.mrf.mxu0
        %v494 = vadd.f32 %v266, %v493
        %v495 = vpop.f32.mrf.mxu0
        %v496 = vadd.f32 %v262, %v495
        %v497 = vpop.f32.mrf.mxu0
        %v498 = vadd.f32 %v266, %v497
        %499 = vmatprep.mubr.bf16.mxu0 0
        %500 = vmatmul.mubr.bf16.gmra.mxu0 %v308
        %v501 = vpop.f32.mrf.mxu0
        %v502 = vadd.f32 %v262, %v501
        %v503 = vpop.f32.mrf.mxu0
        %v504 = vadd.f32 %v266, %v503
        %v505 = vpop.f32.mrf.mxu0
        %v506 = vadd.f32 %v262, %v505
        %v507 = vpop.f32.mrf.mxu0
        %v508 = vadd.f32 %v266, %v507
        %509 = vdwg.mxu0
        %v510 = vpack.c.bf16 %v436, %v432
        %v511 = vpack.c.bf16 %v438, %v434
        %v512 = vpack.c.bf16 %v446, %v442
        %v513 = vpack.c.bf16 %v448, %v444
        %v514 = vpack.c.bf16 %v456, %v452
        %v515 = vpack.c.bf16 %v458, %v454
        %v516 = vpack.c.bf16 %v466, %v462
        %v517 = vpack.c.bf16 %v468, %v464
        %v518 = vpack.c.bf16 %v476, %v472
        %v519 = vpack.c.bf16 %v478, %v474
        %v520 = vpack.c.bf16 %v486, %v482
        %v521 = vpack.c.bf16 %v488, %v484
        %v522 = vpack.c.bf16 %v496, %v492
        %v523 = vpack.c.bf16 %v498, %v494
        %v524 = vpack.c.bf16 %v506, %v502
        %v525 = vpack.c.bf16 %v508, %v504
        %v542 = vunpack.c.l.b16 %v510
        %v543 = vunpack.c.l.b16 %v511
        %v544 = vunpack.c.h.b16 %v510
        %v545 = vunpack.c.h.b16 %v511
        %v546 = vunpack.c.l.b16 %v512
        %v547 = vunpack.c.l.b16 %v513
        %v548 = vunpack.c.h.b16 %v512
        %v549 = vunpack.c.h.b16 %v513
        %v550 = vunpack.c.l.b16 %v514
        %v551 = vunpack.c.l.b16 %v515
        %v552 = vunpack.c.h.b16 %v514
        %v553 = vunpack.c.h.b16 %v515
        %v554 = vunpack.c.l.b16 %v516
        %v555 = vunpack.c.l.b16 %v517
        %v556 = vunpack.c.h.b16 %v516
        %v557 = vunpack.c.h.b16 %v517
        %v558 = vunpack.c.l.b16 %v518
        %v559 = vunpack.c.l.b16 %v519
        %v560 = vunpack.c.h.b16 %v518
        %v561 = vunpack.c.h.b16 %v519
        %v562 = vunpack.c.l.b16 %v520
        %v563 = vunpack.c.l.b16 %v521
        %v564 = vunpack.c.h.b16 %v520
        %v565 = vunpack.c.h.b16 %v521
        %v566 = vunpack.c.l.b16 %v522
        %v567 = vunpack.c.l.b16 %v523
        %v568 = vunpack.c.h.b16 %v522
        %v569 = vunpack.c.h.b16 %v523
        %v570 = vunpack.c.l.b16 %v524
        %v571 = vunpack.c.l.b16 %v525
        %v572 = vunpack.c.h.b16 %v524
        %v573 = vunpack.c.h.b16 %v525
        %v574 = vpack.c.b16 %v543, %v542
        %v575 = vpack.c.b16 %v545, %v544
        %v576 = vpack.c.b16 %v547, %v546
        %v577 = vpack.c.b16 %v549, %v548
        %v578 = vpack.c.b16 %v551, %v550
        %v579 = vpack.c.b16 %v553, %v552
        %v580 = vpack.c.b16 %v555, %v554
        %v581 = vpack.c.b16 %v557, %v556
        %v582 = vpack.c.b16 %v559, %v558
        %v583 = vpack.c.b16 %v561, %v560
        %v584 = vpack.c.b16 %v563, %v562
        %v585 = vpack.c.b16 %v565, %v564
        %v586 = vpack.c.b16 %v567, %v566
        %v587 = vpack.c.b16 %v569, %v568
        %v588 = vpack.c.b16 %v571, %v570
        %v589 = vpack.c.b16 %v573, %v572
        %606 = vst [vmem:[%s221] sm:$0xff] %v574
        %607 = vst [vmem:[%s221 + $0x8] sm:$0xff] %v575
        %608 = vst [vmem:[%s221 + $0x10] sm:$0xff] %v576
        %609 = vst [vmem:[%s221 + $0x18] sm:$0xff] %v577
        %610 = vst [vmem:[%s221 + $0x20] sm:$0xff] %v578
        %611 = vst [vmem:[%s221 + $0x28] sm:$0xff] %v579
        %612 = vst [vmem:[%s221 + $0x30] sm:$0xff] %v580
        %613 = vst [vmem:[%s221 + $0x38] sm:$0xff] %v581
        %614 = vst [vmem:[%s221 + $0x40] sm:$0xff] %v582
        %615 = vst [vmem:[%s221 + $0x48] sm:$0xff] %v583
        %616 = vst [vmem:[%s221 + $0x50] sm:$0xff] %v584
        %617 = vst [vmem:[%s221 + $0x58] sm:$0xff] %v585
        %618 = vst [vmem:[%s221 + $0x60] sm:$0xff] %v586
        %619 = vst [vmem:[%s221 + $0x68] sm:$0xff] %v587
        %620 = vst [vmem:[%s221 + $0x70] sm:$0xff] %v588
        %621 = vst [vmem:[%s221 + $0x78] sm:$0xff] %v589
        %s622 = sand.u32 %s113, 1
        %s623 = scalar_lea.sflag [#allocation4], %s622
        %s624 = sand.u32 %s113, 1
        %s625 = smul.addr %s624, 128
        %s626 = scalar_lea.vmem [#allocation7], %s625
        // Predicated region
        $region41: #{tpu_custom_call.1} parent=31 // pred_check
          %p627 = pneg %p123
        $region42: #{tpu_custom_call.1} parent=31 // pred_check_branch
          %629 = sbr.rel (%p627) target = $region44
        $region43: #{tpu_custom_call.1} parent=31 // pred_region
          %s630 = smul.u32 16, %s26
          %s632 = ssub.s32 2048, 2048
          %633 = vsyncadd %s623, %s632
          %s634 = smul.addr %s630, 2
          %s635 = smul.addr %s25, 32
          %s636 = sadd.s32 %s634, %s635
          %s637 = smul.addr %s636, 64
          %s638 = scalar_lea.hbm %s3, %s637
          %s639 = sshll.u32 %s626, 4
          %s640 = int_to_ptr.vmem [resolvable:$true] %s639
          %645 = dma.vmem_to_hbm [thread:$0]  %s640, 2048, %s638, %s623, 128, 128, 8
        $region44: #{tpu_custom_call.1} parent=31 // pred_fallthru
          _
      $region32: #{tpu_custom_call.1} parent=5 // pred_fallthru
        _
      %p646 = scmp.le.s32.totalorder 2, %s16
      // Predicated region
      $region45: #{tpu_custom_call.1} parent=5 // pred_check
        %p647 = pneg %p646
      $region46: #{tpu_custom_call.1} parent=5 // pred_check_branch
        %649 = sbr.rel (%p647) target = $region48
      $region47: #{tpu_custom_call.1} parent=5 // pred_region
        %s650 = ssub.s32 %s16, 2
        // Predicated region
        $region49: #{tpu_custom_call.1} parent=47 // pred_check
          %p651 = pneg %p129
        $region50: #{tpu_custom_call.1} parent=47 // pred_check_branch
          %653 = sbr.rel (%p651) target = $region52
        $region51: #{tpu_custom_call.1} parent=47 // pred_region
          %s654 = sand.u32 %s114, 1
          %s655 = scalar_lea.sflag [#allocation4], %s654
          %s656 = sand.u32 %s114, 1
          %s657 = smul.addr %s656, 128
          %s658 = scalar_lea.vmem [#allocation7], %s657
          %659 = dma.done %s655, 2048
        $region52: #{tpu_custom_call.1} parent=47 // pred_fallthru
          _
      $region48: #{tpu_custom_call.1} parent=5 // pred_fallthru
        _
    $region6: #{tpu_custom_call.1} parent=1 // loop_footer
      %s20 = sadd.s32 1, %s16
    $region7: #{tpu_custom_call.1} parent=1 // loop_footer_branch
      %15 = sbr.rel target = $region3
    $region8: #{tpu_custom_call.1} parent=1 // loop_exit
      _
    %660 = vsyncpa [#allocation3], 1
    %s661 = scalar_lea.sflag [#allocation3], 1
    %662 = vsyncpa %s661, 1
    %663 = vsyncpa [#allocation6], 1
    %664 = vsyncpa [#allocation4], 1
    %s665 = scalar_lea.sflag [#allocation4], 1
    %666 = vsyncpa %s665, 1

</llo_original>
